<compile_context>
chip_gen: v7x
topology: tpu7x:2x2x1
jax: 0.10.0
libtpu: 0.0.40
codegen_flags: <defaults>
</compile_context>

<pallas_src>
import functools

import jax
import jax.numpy as jnp
from jax.experimental import pallas as pl
from jax.experimental.pallas import tpu as pltpu


def set_attention_kernel(x_ref, lam_ref, gam_ref, o_ref, *,
                         lambda_min, gamma_max, seq_len):
    # x_ref:   (TB, S, D)   VMEM — TB batch rows per grid step
    # lam_ref: (1, 1, D)    VMEM — raw lambda_params (shared across steps)
    # gam_ref: (1, 1)       SMEM — raw gamma scalar
    # o_ref:   (TB, S+1, D) VMEM
    xf = x_ref[...].astype(jnp.float32)                       # (TB, S, D)

    # Mean over the sequence axis, accumulated in f32 (bf16-safe, v5e-safe).
    pooled = jnp.mean(xf, axis=1, keepdims=True)              # (TB, 1, D)

    lam = lambda_min + (1.0 - lambda_min) * jax.nn.sigmoid(
        lam_ref[...].astype(jnp.float32))                     # (1, 1, D)

    # gamma arrives as an SMEM scalar; splat to a tiny vector so the sigmoid
    # runs on the (otherwise idle) EUP rather than the scalar unit.
    g = gam_ref[0, 0]
    gate = gamma_max * jax.nn.sigmoid(
        jnp.full((1, 1, 1), g, dtype=jnp.float32))            # (1, 1, 1)

    fused = lam * xf + gate * pooled                          # (TB, S, D)

    # Two direct stores — no in-kernel concatenate / (S+1) temporary.
    o_ref[:, :seq_len, :] = fused.astype(o_ref.dtype)
    o_ref[:, seq_len:, :] = pooled.astype(o_ref.dtype)


def _pick_batch_tile(B, S, D, itemsize, vmem_budget_bytes=24 * 1024 * 1024):
    """Largest TB whose double-buffered in+out blocks fit a cross-generation
    VMEM budget, capped so the grid keeps >= 2 steps when B allows (v7x has
    2 TensorCores per chip)."""
    bytes_per_row = (S + (S + 1)) * D * itemsize          # one input + one output row
    tb = max(1, vmem_budget_bytes // (2 * bytes_per_row)) # x2 for double-buffering
    tb = min(tb, B)
    if B >= 2:
        tb = min(tb, pl.cdiv(B, 2))
    return int(tb)


def set_attention(x, lambda_params, gamma2d, *, lambda_min=0.7, gamma_max=0.3):
    B, S, D = x.shape
    tb = _pick_batch_tile(B, S, D, jnp.dtype(x.dtype).itemsize)
    grid = (pl.cdiv(B, tb),)

    kernel = functools.partial(
        set_attention_kernel,
        lambda_min=lambda_min, gamma_max=gamma_max, seq_len=S,
    )
    return pl.pallas_call(
        kernel,
        out_shape=jax.ShapeDtypeStruct((B, S + 1, D), x.dtype),
        grid=grid,
        in_specs=[
            pl.BlockSpec((tb, S, D), lambda b: (b, 0, 0)),          # x: TB rows/step
            pl.BlockSpec((1, 1, D), lambda b: (0, 0, 0)),           # lambda_params
            pl.BlockSpec(memory_space=pltpu.MemorySpace.SMEM),      # gamma scalar
        ],
        out_specs=pl.BlockSpec((tb, S + 1, D), lambda b: (b, 0, 0)),
        compiler_params=pltpu.CompilerParams(
            dimension_semantics=("parallel",),
            vmem_limit_bytes=32 * 1024 * 1024,
        ),
    )(x, lambda_params, gamma2d)


def set_attention_ref(x, lambda_params, gamma, lambda_min=0.7, gamma_max=0.3):
    """Pure-JAX reference mirroring the PyTorch forward."""
    pooled = jnp.mean(x, axis=1, keepdims=True)
    lambda_val = lambda_min + (1.0 - lambda_min) * jax.nn.sigmoid(lambda_params)
    gamma_val = gamma_max * jax.nn.sigmoid(gamma)
    fused = lambda_val * x + gamma_val * pooled
    return jnp.concatenate([fused, pooled], axis=1)


if __name__ == "__main__":
    # Small shapes implied by the forward: (batch, seq, state_size).
    # state_size=128 keeps the output last dim lane-dense (multiple of 128).
    B, S, D = 2, 8, 128
    key = jax.random.PRNGKey(0)
    x = jax.random.normal(key, (B, S, D), dtype=jnp.float32)

    # Deterministic parameter init (matches the module's __init__ values).
    lambda_params = jnp.full((1, 1, D), 0.85, dtype=jnp.float32)
    gamma2d = jnp.full((1, 1), 0.1, dtype=jnp.float32)   # torch scalar param, (1,1) for SMEM

    out = set_attention(x, lambda_params, gamma2d, lambda_min=0.7, gamma_max=0.3)
    out = jax.block_until_ready(out)

    ref = set_attention_ref(x, lambda_params, gamma2d[0, 0], 0.7, 0.3)
    assert out.shape == (B, S + 1, D), out.shape
    assert jnp.allclose(out, ref, atol=1e-5, rtol=1e-5), "mismatch vs reference"

    print("KERNEL_OK")
</pallas_src>

<mosaic_0001>
module attributes {stable_mosaic.version = 11 : i64} {
  func.func @set_attention_kernel(%arg0: i32, %arg1: memref<1x8x128xf32, #tpu.memory_space<vmem>>, %arg2: memref<1x1x128xf32, #tpu.memory_space<vmem>>, %arg3: memref<1x1xf32, #tpu.memory_space<smem>>, %arg4: memref<1x9x128xf32, #tpu.memory_space<vmem>>) attributes {dimension_semantics = [#tpu.dimension_semantics<parallel>], iteration_bounds = array<i64: 2>, scalar_prefetch = 0 : i64, scratch_operands = 0 : i64, tpu.core_type = #tpu.core_type<tc>, window_params = [{transform_indices = @transform_0, window_bounds = array<i64: 1, 8, 128>}, {pipeline_mode = #tpu.pipeline_mode<synchronous>, transform_indices = @transform_1, window_bounds = array<i64: 1, 1, 128>}, {transform_indices = @transform_2, window_bounds = array<i64: 1, 1>}, {transform_indices = @transform_3, window_bounds = array<i64: 1, 9, 128>}]} {
    %c0 = arith.constant 0 : index
    %c0_0 = arith.constant 0 : index
    %c0_1 = arith.constant 0 : index
    %0 = vector.load %arg1[%c0, %c0_0, %c0_1] : memref<1x8x128xf32, #tpu.memory_space<vmem>>, vector<1x8x128xf32>
    %cst = arith.constant dense<0.000000e+00> : vector<1x128xf32>
    %1 = vector.multi_reduction <add>, %0, %cst [1] : vector<1x8x128xf32> to vector<1x128xf32>
    %2 = vector.shape_cast %1 : vector<1x128xf32> to vector<1x1x128xf32>
    %cst_2 = arith.constant 8.000000e+00 : f32
    %3 = vector.broadcast %cst_2 : f32 to vector<1x1x128xf32>
    %4 = arith.divf %2, %3 : vector<1x1x128xf32>
    %c0_3 = arith.constant 0 : index
    %c0_4 = arith.constant 0 : index
    %c0_5 = arith.constant 0 : index
    %5 = vector.load %arg2[%c0_3, %c0_4, %c0_5] : memref<1x1x128xf32, #tpu.memory_space<vmem>>, vector<1x1x128xf32>
    %6 = arith.negf %5 : vector<1x1x128xf32>
    %7 = math.exp %6 : vector<1x1x128xf32>
    %cst_6 = arith.constant 1.000000e+00 : f32
    %8 = vector.broadcast %cst_6 : f32 to vector<1x1x128xf32>
    %9 = arith.addf %8, %7 : vector<1x1x128xf32>
    %10 = arith.divf %8, %9 : vector<1x1x128xf32>
    %cst_7 = arith.constant 3.000000e-01 : f32
    %11 = vector.broadcast %cst_7 : f32 to vector<1x1x128xf32>
    %12 = arith.mulf %11, %10 : vector<1x1x128xf32>
    %cst_8 = arith.constant 0.699999988 : f32
    %13 = vector.broadcast %cst_8 : f32 to vector<1x1x128xf32>
    %14 = arith.addf %13, %12 : vector<1x1x128xf32>
    %c0_9 = arith.constant 0 : index
    %c0_10 = arith.constant 0 : index
    %15 = memref.load %arg3[%c0_9, %c0_10] : memref<1x1xf32, #tpu.memory_space<smem>>
    %16 = vector.broadcast %15 : f32 to vector<1x1x1xf32>
    %17 = arith.negf %16 : vector<1x1x1xf32>
    %18 = math.exp %17 : vector<1x1x1xf32>
    %cst_11 = arith.constant 1.000000e+00 : f32
    %19 = vector.broadcast %cst_11 : f32 to vector<1x1x1xf32>
    %20 = arith.addf %19, %18 : vector<1x1x1xf32>
    %21 = arith.divf %19, %20 : vector<1x1x1xf32>
    %cst_12 = arith.constant 3.000000e-01 : f32
    %22 = vector.broadcast %cst_12 : f32 to vector<1x1x1xf32>
    %23 = arith.mulf %22, %21 : vector<1x1x1xf32>
    %24 = vector.broadcast %14 : vector<1x1x128xf32> to vector<1x8x128xf32>
    %25 = arith.mulf %24, %0 : vector<1x8x128xf32>
    %26 = vector.broadcast %23 : vector<1x1x1xf32> to vector<1x1x128xf32>
    %27 = arith.mulf %26, %4 : vector<1x1x128xf32>
    %28 = vector.broadcast %27 : vector<1x1x128xf32> to vector<1x8x128xf32>
    %29 = arith.addf %25, %28 : vector<1x8x128xf32>
    %c0_13 = arith.constant 0 : index
    %c0_14 = arith.constant 0 : index
    %c0_15 = arith.constant 0 : index
    %30 = vector.load %arg4[%c0_13, %c0_14, %c0_15] : memref<1x9x128xf32, #tpu.memory_space<vmem>>, vector<1x8x128xf32>
    tpu.vector_store %arg4[%c0_13, %c0_14, %c0_15], %29 {strides = array<i32>} : memref<1x9x128xf32, #tpu.memory_space<vmem>>, vector<1x8x128xf32>,
    %c0_16 = arith.constant 0 : index
    %c8 = arith.constant 8 : index
    %c0_17 = arith.constant 0 : index
    %31 = vector.load %arg4[%c0_16, %c8, %c0_17] : memref<1x9x128xf32, #tpu.memory_space<vmem>>, vector<1x1x128xf32>
    tpu.vector_store %arg4[%c0_16, %c8, %c0_17], %4 {strides = array<i32>} : memref<1x9x128xf32, #tpu.memory_space<vmem>>, vector<1x1x128xf32>,
    return
  }
  func.func @transform_0(%arg0: i32) -> (i32, i32, i32) {
    %c0_i32 = arith.constant 0 : i32
    %c0_i32_0 = arith.constant 0 : i32
    %c0_i32_1 = arith.constant 0 : i32
    return %arg0, %c0_i32, %c0_i32_0 : i32, i32, i32
  }
  func.func @transform_1(%arg0: i32) -> (i32, i32, i32) {
    %c0_i32 = arith.constant 0 : i32
    %c0_i32_0 = arith.constant 0 : i32
    %c0_i32_1 = arith.constant 0 : i32
    %c0_i32_2 = arith.constant 0 : i32
    return %c0_i32, %c0_i32_0, %c0_i32_1 : i32, i32, i32
  }
  func.func @transform_2(%arg0: i32) -> (i32, i32) {
    %c0_i32 = arith.constant 0 : i32
    %c0_i32_0 = arith.constant 0 : i32
    %c0_i32_1 = arith.constant 0 : i32
    return %c0_i32, %c0_i32_0 : i32, i32
  }
  func.func @transform_3(%arg0: i32) -> (i32, i32, i32) {
    %c0_i32 = arith.constant 0 : i32
    %c0_i32_0 = arith.constant 0 : i32
    %c0_i32_1 = arith.constant 0 : i32
    return %arg0, %c0_i32, %c0_i32_0 : i32, i32, i32
  }
}

</mosaic_0001>

<llo_original>
// kernel: tpu_custom_call.1
$region0: #{tpu_custom_call.1}
  #allocation0 [shape = 'u32[]', space=smem, size = 0x4, offset = 0x4, fixed_abs, tag = 'smem constant byte address 0x4 - core index']
  #allocation1 [shape = 'u32[144,128]{1,0:T(1,128)}', space=vmem, size = 0x12000, scoped, tag = 'internal scratch']
  #allocation2 [shape = 'f32[1,1]{1,0:T(1,128)S(6)}', space=smem, size = 0x200, scoped, tag = 'scoped memory for tpu_custom_call.1']
  %s0 = inlined_call_operand.hbm [shape: f32[2,8,128], index: 0, kind: input, shape index: {}]
  %s1 = inlined_call_operand.vmem [shape: f32[1,1,128], index: 1, kind: input, shape index: {}]
  %s2 = inlined_call_operand.<no memory space> [shape: f32[1,1], index: 2, kind: input, shape index: {}]
  %s3 = inlined_call_operand.vmem [shape: f32[2,9,128], index: 3, kind: output, shape index: {}]
  %s4 = sld [smem:[#allocation0]]
  $region49: #{tpu_custom_call.1} parent=0
    _
  %s6 = ssub.s32 1, %s4
  %s7 = scalar_select 0, %s6, %s4
  %8 = sst [smem:[#allocation2]] %s2
  $region1: #{tpu_custom_call.1} parent=0
    #allocation3 [shape = 'u8[8192]{0}', space=vmem, size = 0x2000, scoped, tag = 'input window, operand 0']
    #allocation4 [shape = 's32[2]{0}', space=sflag, size = 0x8, scoped, tag = 'scoped memory for tpu_custom_call.1']
    %9 = vsyncpa [#allocation4], 0
    %s10 = scalar_lea.sflag [#allocation4], 1
    %11 = vsyncpa %s10, 0
    loop: start=0, step=1, limit=4
    $region2: #{tpu_custom_call.1} parent=1 // loop_pre_header
      _
    $region3: #{tpu_custom_call.1} parent=1 // loop_header
      %s13 = sphi 0, %s17
      %p14 = scmp.ge.s32.totalorder %s13, 4
      %s23 = sphi 0, %s25
      %s26 = sphi 0, %s23
      %s27 = sphi 0, %s26
      %s43 = sphi 0, %s27
      %s47 = sphi 0, %s47
      %s49 = sphi 0, %s47
      %s50 = sphi 0, %s49
      %s64 = sphi 0, %s50
      %s68 = sphi 0, %s68
      %s70 = sphi 0, %s68
      %s71 = sphi 0, %s70
      %s85 = sphi 0, %s71
      %s91 = sphi 0, %s93
      %s94 = sphi 0, %s91
      %s95 = sphi 0, %s94
      %s111 = sphi 0, %s95
    $region4: #{tpu_custom_call.1} parent=1 // loop_header_branch
      %16 = sbr.rel (%p14) target = $region8
    $region5: #{tpu_custom_call.1} parent=1 // loop_body
      %s18 = ssub.s32 %s13, 1
      %s19 = ssub.s32 %s13, 2
      %s20 = sadd.s32 %s13, 1
      %s21 = ssub.s32 %s13, %s20
      %p22 = scmp.eq.s32.totalorder %s21, 0
      %s24 = sadd.s32 %s23, 1
      %s25 = scalar_select %p22, %s23, %s24
      %p28 = pneg %p22
      %p29 = scmp.eq.s32.totalorder %s13, 1
      %p30 = por %p28, %p29
      %p31 = scmp.ne.s32.totalorder %s23, %s26
      %p32 = scmp.eq.s32.totalorder %s13, 0
      %p33 = por %p31, %p32
      %p34 = scmp.ne.s32.totalorder %s23, %s26
      %p35 = scmp.eq.s32.totalorder %s18, 1
      %p36 = por %p34, %p35
      %p37 = scmp.ne.s32.totalorder %s26, %s27
      %p38 = scmp.eq.s32.totalorder %s18, 0
      %p39 = por %p37, %p38
      %p40 = scmp.ne.s32.totalorder %s26, %s27
      %p41 = scmp.eq.s32.totalorder %s19, 1
      %p42 = por %p40, %p41
      %p44 = scmp.ne.s32.totalorder %s27, %s43
      %p45 = scmp.eq.s32.totalorder %s19, 0
      %p46 = por %p44, %p45
      %s48 = sadd.s32 %s47, 1
      %p51 = scmp.eq.s32.totalorder %s13, 1
      %p52 = scmp.ne.s32.totalorder %s47, %s49
      %p53 = scmp.eq.s32.totalorder %s13, 0
      %p54 = por %p52, %p53
      %p55 = scmp.ne.s32.totalorder %s47, %s49
      %p56 = scmp.eq.s32.totalorder %s18, 1
      %p57 = por %p55, %p56
      %p58 = scmp.ne.s32.totalorder %s49, %s50
      %p59 = scmp.eq.s32.totalorder %s18, 0
      %p60 = por %p58, %p59
      %p61 = scmp.ne.s32.totalorder %s49, %s50
      %p62 = scmp.eq.s32.totalorder %s19, 1
      %p63 = por %p61, %p62
      %p65 = scmp.ne.s32.totalorder %s50, %s64
      %p66 = scmp.eq.s32.totalorder %s19, 0
      %p67 = por %p65, %p66
      %s69 = sadd.s32 %s68, 1
      %p72 = scmp.eq.s32.totalorder %s13, 1
      %p73 = scmp.ne.s32.totalorder %s68, %s70
      %p74 = scmp.eq.s32.totalorder %s13, 0
      %p75 = por %p73, %p74
      %p76 = scmp.ne.s32.totalorder %s68, %s70
      %p77 = scmp.eq.s32.totalorder %s18, 1
      %p78 = por %p76, %p77
      %p79 = scmp.ne.s32.totalorder %s70, %s71
      %p80 = scmp.eq.s32.totalorder %s18, 0
      %p81 = por %p79, %p80
      %p82 = scmp.ne.s32.totalorder %s70, %s71
      %p83 = scmp.eq.s32.totalorder %s19, 1
      %p84 = por %p82, %p83
      %p86 = scmp.ne.s32.totalorder %s71, %s85
      %p87 = scmp.eq.s32.totalorder %s19, 0
      %p88 = por %p86, %p87
      %s89 = ssub.s32 %s13, %s20
      %p90 = scmp.eq.s32.totalorder %s89, 0
      %s92 = sadd.s32 %s91, 1
      %s93 = scalar_select %p90, %s91, %s92
      %p96 = pneg %p90
      %p97 = scmp.eq.s32.totalorder %s13, 1
      %p98 = por %p96, %p97
      %p99 = scmp.ne.s32.totalorder %s91, %s94
      %p100 = scmp.eq.s32.totalorder %s13, 0
      %p101 = por %p99, %p100
      %p102 = scmp.ne.s32.totalorder %s91, %s94
      %p103 = scmp.eq.s32.totalorder %s18, 1
      %p104 = por %p102, %p103
      %p105 = scmp.ne.s32.totalorder %s94, %s95
      %p106 = scmp.eq.s32.totalorder %s18, 0
      %p107 = por %p105, %p106
      %p108 = scmp.ne.s32.totalorder %s94, %s95
      %p109 = scmp.eq.s32.totalorder %s19, 1
      %p110 = por %p108, %p109
      %p112 = scmp.ne.s32.totalorder %s95, %s111
      %p113 = scmp.eq.s32.totalorder %s19, 0
      %p114 = por %p112, %p113
      %p115 = scmp.le.s32.totalorder 1, %s13
      %p116 = scmp.lt.s32.totalorder %s13, 3
      %p117 = pnand %p115, %p116
      %p118 = pneg %p117
      // Predicated region
      $region9: #{tpu_custom_call.1} parent=5 // pred_check
        _
      $region10: #{tpu_custom_call.1} parent=5 // pred_check_branch
        %120 = sbr.rel (%p117) target = $region12
      $region11: #{tpu_custom_call.1} parent=5 // pred_region
        %s121 = ssub.s32 %s13, 1
        // Predicated region
        $region13: #{tpu_custom_call.1} parent=11 // pred_check
          %p122 = pneg %p60
        $region14: #{tpu_custom_call.1} parent=11 // pred_check_branch
          %124 = sbr.rel (%p122) target = $region16
        $region15: #{tpu_custom_call.1} parent=11 // pred_region
          _
        $region16: #{tpu_custom_call.1} parent=11 // pred_fallthru
          _
        // Predicated region
        $region17: #{tpu_custom_call.1} parent=11 // pred_check
          %p125 = pneg %p81
        $region18: #{tpu_custom_call.1} parent=11 // pred_check_branch
          %127 = sbr.rel (%p125) target = $region20
        $region19: #{tpu_custom_call.1} parent=11 // pred_region
          _
        $region20: #{tpu_custom_call.1} parent=11 // pred_fallthru
          _
      $region12: #{tpu_custom_call.1} parent=5 // pred_fallthru
        _
      %p128 = scmp.lt.s32.totalorder %s13, 2
      // Predicated region
      $region21: #{tpu_custom_call.1} parent=5 // pred_check
        %p129 = pneg %p128
      $region22: #{tpu_custom_call.1} parent=5 // pred_check_branch
        %131 = sbr.rel (%p129) target = $region24
      $region23: #{tpu_custom_call.1} parent=5 // pred_region
        // Predicated region
        $region25: #{tpu_custom_call.1} parent=23 // pred_check
          %p132 = pneg %p33
        $region26: #{tpu_custom_call.1} parent=23 // pred_check_branch
          %134 = sbr.rel (%p132) target = $region28
        $region27: #{tpu_custom_call.1} parent=23 // pred_region
          %s135 = sand.u32 %s23, 1
          %s136 = scalar_lea.sflag [#allocation4], %s135
          %s137 = sand.u32 %s23, 1
          %s138 = smul.addr %s137, 8
          %s139 = scalar_lea.vmem [#allocation3], %s138
          %s141 = ssub.s32 128, 128
          %142 = vsyncadd %s136, %s141
          %s143 = smul.addr %s13, 128
          %s144 = scalar_lea.hbm %s0, %s143
          %s146 = sshll.u32 %s139, 4
          %s147 = int_to_ptr.vmem [resolvable:$true] %s146
          %149 = dma.hbm_to_vmem [thread:$0]  %s144, 128, %s147, %s136
        $region28: #{tpu_custom_call.1} parent=23 // pred_fallthru
          _
      $region24: #{tpu_custom_call.1} parent=5 // pred_fallthru
        _
      %p150 = scmp.le.s32.totalorder 1, %s13
      %p151 = scmp.lt.s32.totalorder %s13, 3
      %p152 = pnand %p150, %p151
      %p153 = pneg %p152
      // Predicated region
      $region29: #{tpu_custom_call.1} parent=5 // pred_check
        _
      $region30: #{tpu_custom_call.1} parent=5 // pred_check_branch
        %155 = sbr.rel (%p152) target = $region32
      $region31: #{tpu_custom_call.1} parent=5 // pred_region
        %s156 = ssub.s32 %s13, 1
        %s157 = sand.u32 %s26, 1
        %s158 = scalar_lea.sflag [#allocation4], %s157
        %s159 = sand.u32 %s26, 1
        %s160 = smul.addr %s159, 8
        %s161 = scalar_lea.vmem [#allocation3], %s160
        // Predicated region
        $region33: #{tpu_custom_call.1} parent=31 // pred_check
          %p162 = pneg %p39
        $region34: #{tpu_custom_call.1} parent=31 // pred_check_branch
          %164 = sbr.rel (%p162) target = $region36
        $region35: #{tpu_custom_call.1} parent=31 // pred_region
          %165 = dma.done %s158, 128
        $region36: #{tpu_custom_call.1} parent=31 // pred_fallthru
          _
        %s166 = sand.u32 %s26, 1
        %s167 = scalar_lea.sflag [#allocation4], %s166
        %s168 = sand.u32 %s26, 1
        %s169 = smul.addr %s168, 8
        %s170 = scalar_lea.vmem [#allocation3], %s169
        %p171 = pneg %p39
        %p172 = pneg %p36
        %p173 = pneg %p60
        %p174 = pneg %p57
        %p175 = pneg %p81
        %p176 = pneg %p78
        %p177 = pneg %p107
        %p178 = pneg %p104
        %p179 = scmp.lt.s32.totalorder %s18, 1
        %s180 = scalar_select %p179, %s18, 1
        %s181 = smul.addr %s180, 2
        %s182 = smul.addr %s181, 8
        %s183 = scalar_lea.vmem %s3, %s182
        %p184 = scmp.lt.s32.totalorder %s18, 1
        %s185 = scalar_select %p184, %s18, 1
        %s186 = smul.addr %s185, 2
        %s187 = smul.addr %s186, 8
        %s188 = scalar_lea.vmem %s3, %s187
        %v189 = vld [vmem:[%s161] sm:$0xff]
        %v190 = vrot.slane %v189, 4
        %v191 = vadd.f32 %v189, %v190
        %v192 = vrot.slane %v191, 2
        %v193 = vadd.f32 %v191, %v192
        %v194 = vrot.slane %v193, 1
        %v195 = vadd.f32 %v193, %v194
        %v196 = vrcp.pop 8.0
        %v197 = vmul.f32 %v195, %v196
        %v198 = vld [vmem:[%s1] sm:$0x1]
        %v199 = vxor.u32 %v198, 2147483648
        %v200 = vmul.f32 %v199, 1.442695
        %v201 = vpow.pop %v200
        %v202 = vadd.f32 %v201, 1.0
        %v203 = vrcp.pop %v202
        %v204 = vmul.f32 1.0, %v203
        %v205 = vmul.f32 %v204, 0.3
        %v206 = vadd.f32 %v205, 0.7
        %s207 = sld [smem:[#allocation2]]
        %v208 = vstv %s207
        %v209 = vxor.u32 %v208, 2147483648
        %v210 = vmul.f32 %v209, 1.442695
        %v211 = vpow.pop %v210
        %v212 = vadd.f32 %v211, 1.0
        %v213 = vrcp.pop %v212
        %v214 = vmul.f32 1.0, %v213
        %v215 = vmul.f32 %v214, 0.3
        %v217 = vlaneseq
        %v218 = vshrl.u32 %v217, 7
        %v219 = vsub.s32 0, %v218
        %v220 = vrot.slane %v206, %v219
        %v222 = vmul.f32 %v220, %v189
        %v223 = vmul.f32 %v215, %v197
        %v224 = vadd.f32 %v222, %v223
        %225 = vst [vmem:[%s188] sm:$0xff] %v224
        %226 = vst [vmem:[%s188 + $0x8] sm:$0x1] %v197
        %p227 = scmp.lt.s32.totalorder %s18, 1
        %s228 = scalar_select %p227, %s18, 1
        %s229 = smul.addr %s228, 2
        %s230 = smul.addr %s229, 8
        %s231 = scalar_lea.vmem %s3, %s230
        // Predicated region
        $region37: #{tpu_custom_call.1} parent=31 // pred_check
          %p232 = pneg %p104
        $region38: #{tpu_custom_call.1} parent=31 // pred_check_branch
          %234 = sbr.rel (%p232) target = $region40
        $region39: #{tpu_custom_call.1} parent=31 // pred_region
          _
        $region40: #{tpu_custom_call.1} parent=31 // pred_fallthru
          _
      $region32: #{tpu_custom_call.1} parent=5 // pred_fallthru
        _
      %p235 = scmp.le.s32.totalorder 2, %s13
      // Predicated region
      $region41: #{tpu_custom_call.1} parent=5 // pred_check
        %p236 = pneg %p235
      $region42: #{tpu_custom_call.1} parent=5 // pred_check_branch
        %238 = sbr.rel (%p236) target = $region44
      $region43: #{tpu_custom_call.1} parent=5 // pred_region
        %s239 = ssub.s32 %s13, 2
        // Predicated region
        $region45: #{tpu_custom_call.1} parent=43 // pred_check
          %p240 = pneg %p110
        $region46: #{tpu_custom_call.1} parent=43 // pred_check_branch
          %242 = sbr.rel (%p240) target = $region48
        $region47: #{tpu_custom_call.1} parent=43 // pred_region
          %p243 = scmp.lt.s32.totalorder %s19, 1
          %s244 = scalar_select %p243, %s19, 1
          %s245 = smul.addr %s244, 2
          %s246 = smul.addr %s245, 8
          %s247 = scalar_lea.vmem %s3, %s246
        $region48: #{tpu_custom_call.1} parent=43 // pred_fallthru
          _
      $region44: #{tpu_custom_call.1} parent=5 // pred_fallthru
        _
    $region6: #{tpu_custom_call.1} parent=1 // loop_footer
      %s17 = sadd.s32 1, %s13
    $region7: #{tpu_custom_call.1} parent=1 // loop_footer_branch
      %12 = sbr.rel target = $region3
    $region8: #{tpu_custom_call.1} parent=1 // loop_exit
      _
    %248 = vsyncpa [#allocation4], 1
    %s249 = scalar_lea.sflag [#allocation4], 1
    %250 = vsyncpa %s249, 1

</llo_original>
